<compile_context>
chip_gen: v7x
topology: tpu7x:2x2x1
jax: 0.10.0
libtpu: 0.0.40
codegen_flags: <defaults>
</compile_context>

<pallas_src>
import jax
import jax.numpy as jnp
import numpy as np
from jax.experimental import pallas as pl
from jax.experimental.pallas import tpu as pltpu


def mlp_kernel(x_ref, w1_ref, b1_ref, w2_ref, b2_ref, w3_ref, b3_ref, out_ref):
    # x tile: (F, tn)  — samples on lanes.
    x = x_ref[...]
    # Layer 1: (H, F) @ (F, tn) -> (H, tn), + column bias, ReLU.
    h1 = jnp.dot(w1_ref[...], x, preferred_element_type=jnp.float32) + b1_ref[...]
    h1 = jnp.maximum(h1, 0.0)
    # Layer 2: (H, H) @ (H, tn) -> (H, tn), + column bias, ReLU.
    h2 = jnp.dot(w2_ref[...], h1, preferred_element_type=jnp.float32) + b2_ref[...]
    h2 = jnp.maximum(h2, 0.0)
    # Output layer: (1, H) @ (H, tn) -> (1, tn), + scalar bias (SMEM).
    logits = jnp.dot(w3_ref[...], h2, preferred_element_type=jnp.float32) + b3_ref[0]
    # Lane-dense (1, tn) output tile.
    out_ref[...] = jax.nn.sigmoid(logits)


def simple_mlp_forward(x, w1, b1, w2, b2, w3, b3, *, tn=512):
    """Pallas forward for SimpleMLP.

    x: (N, F) float32.  Weights/biases in torch nn.Linear layout:
    w1 (H, F), b1 (H,), w2 (H, H), b2 (H,), w3 (1, H), b3 (1,).
    Returns sigmoid(logits) of shape (N, 1), matching the torch module.
    """
    N, F = x.shape
    H = w1.shape[0]

    # Samples onto the lane axis; pad N up to a multiple of the lane tile.
    x_t = jnp.asarray(x, jnp.float32).T                    # (F, N)
    n_pad = (-N) % tn
    if n_pad:
        x_t = jnp.pad(x_t, ((0, 0), (0, n_pad)))
    n_padded = N + n_pad
    grid = (n_padded // tn,)

    b1c = jnp.asarray(b1, jnp.float32).reshape(H, 1)
    b2c = jnp.asarray(b2, jnp.float32).reshape(H, 1)
    w3r = jnp.asarray(w3, jnp.float32).reshape(1, H)
    b3s = jnp.asarray(b3, jnp.float32).reshape(1)

    flops = 2 * N * (F * H + H * H + H)
    bytes_accessed = 4 * (N * F + N + F * H + H * H + H + 2 * H + 1)

    out = pl.pallas_call(
        mlp_kernel,
        out_shape=jax.ShapeDtypeStruct((1, n_padded), jnp.float32),
        grid=grid,
        in_specs=[
            # x streams over the sample axis (double-buffered by Pallas).
            pl.BlockSpec((F, tn), lambda i: (0, i)),
            # Parameters: constant index_map -> resident in VMEM.
            pl.BlockSpec((H, F), lambda i: (0, 0)),
            pl.BlockSpec((H, 1), lambda i: (0, 0)),
            pl.BlockSpec((H, H), lambda i: (0, 0)),
            pl.BlockSpec((H, 1), lambda i: (0, 0)),
            pl.BlockSpec((1, H), lambda i: (0, 0)),
            # Scalar output bias in SMEM.
            pl.BlockSpec(memory_space=pltpu.MemorySpace.SMEM),
        ],
        out_specs=pl.BlockSpec((1, tn), lambda i: (0, i)),
        compiler_params=pltpu.CompilerParams(
            dimension_semantics=("parallel",),
            vmem_limit_bytes=32 * 1024 * 1024,
        ),
        cost_estimate=pl.CostEstimate(
            flops=flops,
            transcendentals=N,
            bytes_accessed=bytes_accessed,
        ),
    )(x_t, jnp.asarray(w1, jnp.float32), b1c,
      jnp.asarray(w2, jnp.float32), b2c, w3r, b3s)

    # (1, n_padded) -> strip padding -> (N, 1), matching torch.sigmoid(logits).
    return out[:, :N].reshape(N, 1)


def reference_forward(x, w1, b1, w2, b2, w3, b3):
    h1 = np.maximum(x @ w1.T + b1, 0.0)
    h2 = np.maximum(h1 @ w2.T + b2, 0.0)
    logits = h2 @ w3.T + b3
    return 1.0 / (1.0 + np.exp(-logits))


if __name__ == "__main__":
    # Small deterministic configuration.
    N, F, H = 256, 16, 32          # batch, n_features, n_hidden
    tn = 128                       # sample tile (multiple of 128) -> grid (2,)

    key = jax.random.PRNGKey(0)
    kx, k1, k2, k3, k4, k5, k6 = jax.random.split(key, 7)

    x = jax.random.normal(kx, (N, F), dtype=jnp.float32)
    # torch nn.Linear layout: weight (out, in), bias (out,)
    w1 = 0.5 * jax.random.normal(k1, (H, F), dtype=jnp.float32)
    b1 = 0.1 * jax.random.normal(k2, (H,), dtype=jnp.float32)
    w2 = 0.5 * jax.random.normal(k3, (H, H), dtype=jnp.float32)
    b2 = 0.1 * jax.random.normal(k4, (H,), dtype=jnp.float32)
    w3 = 0.5 * jax.random.normal(k5, (1, H), dtype=jnp.float32)
    b3 = 0.1 * jax.random.normal(k6, (1,), dtype=jnp.float32)

    out = simple_mlp_forward(x, w1, b1, w2, b2, w3, b3, tn=tn)
    out = jax.block_until_ready(out)

    ref = reference_forward(np.asarray(x), np.asarray(w1), np.asarray(b1),
                            np.asarray(w2), np.asarray(b2),
                            np.asarray(w3), np.asarray(b3))
    np.testing.assert_allclose(np.asarray(out), ref, rtol=1e-5, atol=1e-5)

    print("KERNEL_OK")
</pallas_src>

<mosaic_0001>
module attributes {stable_mosaic.version = 11 : i64} {
  func.func @mlp_kernel(%arg0: i32, %arg1: memref<16x128xf32, #tpu.memory_space<vmem>>, %arg2: memref<32x16xf32, #tpu.memory_space<vmem>>, %arg3: memref<32x1xf32, #tpu.memory_space<vmem>>, %arg4: memref<32x32xf32, #tpu.memory_space<vmem>>, %arg5: memref<32x1xf32, #tpu.memory_space<vmem>>, %arg6: memref<1x32xf32, #tpu.memory_space<vmem>>, %arg7: memref<1xf32, #tpu.memory_space<smem>>, %arg8: memref<1x128xf32, #tpu.memory_space<vmem>>) attributes {dimension_semantics = [#tpu.dimension_semantics<parallel>], iteration_bounds = array<i64: 2>, scalar_prefetch = 0 : i64, scratch_operands = 0 : i64, tpu.core_type = #tpu.core_type<tc>, window_params = [{transform_indices = @transform_0, window_bounds = array<i64: 16, 128>}, {pipeline_mode = #tpu.pipeline_mode<synchronous>, transform_indices = @transform_1, window_bounds = array<i64: 32, 16>}, {pipeline_mode = #tpu.pipeline_mode<synchronous>, transform_indices = @transform_2, window_bounds = array<i64: 32, 1>}, {pipeline_mode = #tpu.pipeline_mode<synchronous>, transform_indices = @transform_3, window_bounds = array<i64: 32, 32>}, {pipeline_mode = #tpu.pipeline_mode<synchronous>, transform_indices = @transform_4, window_bounds = array<i64: 32, 1>}, {pipeline_mode = #tpu.pipeline_mode<synchronous>, transform_indices = @transform_5, window_bounds = array<i64: 1, 32>}, {transform_indices = @transform_6, window_bounds = array<i64: 1>}, {transform_indices = @transform_7, window_bounds = array<i64: 1, 128>}]} {
    %c0 = arith.constant 0 : index
    %c0_0 = arith.constant 0 : index
    %0 = vector.load %arg1[%c0, %c0_0] : memref<16x128xf32, #tpu.memory_space<vmem>>, vector<16x128xf32>
    %c0_1 = arith.constant 0 : index
    %c0_2 = arith.constant 0 : index
    %1 = vector.load %arg2[%c0_1, %c0_2] : memref<32x16xf32, #tpu.memory_space<vmem>>, vector<32x16xf32>
    %cst = arith.constant dense<0.000000e+00> : vector<32x128xf32>
    %2 = tpu.matmul %1, %0, %cst {dimension_numbers = #tpu.dot_dimension_numbers<[1], [0], [0], [1], [0, 0, 1, 1], [], []>} : vector<32x16xf32>, vector<16x128xf32>, vector<32x128xf32> -> vector<32x128xf32>
    %c0_3 = arith.constant 0 : index
    %c0_4 = arith.constant 0 : index
    %3 = vector.load %arg3[%c0_3, %c0_4] : memref<32x1xf32, #tpu.memory_space<vmem>>, vector<32x1xf32>
    %4 = vector.broadcast %3 : vector<32x1xf32> to vector<32x128xf32>
    %5 = arith.addf %2, %4 : vector<32x128xf32>
    %cst_5 = arith.constant 0.000000e+00 : f32
    %6 = vector.broadcast %cst_5 : f32 to vector<32x128xf32>
    %7 = arith.maximumf %5, %6 : vector<32x128xf32>
    %c0_6 = arith.constant 0 : index
    %c0_7 = arith.constant 0 : index
    %8 = vector.load %arg4[%c0_6, %c0_7] : memref<32x32xf32, #tpu.memory_space<vmem>>, vector<32x32xf32>
    %cst_8 = arith.constant dense<0.000000e+00> : vector<32x128xf32>
    %9 = tpu.matmul %8, %7, %cst_8 {dimension_numbers = #tpu.dot_dimension_numbers<[1], [0], [0], [1], [0, 0, 1, 1], [], []>} : vector<32x32xf32>, vector<32x128xf32>, vector<32x128xf32> -> vector<32x128xf32>
    %c0_9 = arith.constant 0 : index
    %c0_10 = arith.constant 0 : index
    %10 = vector.load %arg5[%c0_9, %c0_10] : memref<32x1xf32, #tpu.memory_space<vmem>>, vector<32x1xf32>
    %11 = vector.broadcast %10 : vector<32x1xf32> to vector<32x128xf32>
    %12 = arith.addf %9, %11 : vector<32x128xf32>
    %cst_11 = arith.constant 0.000000e+00 : f32
    %13 = vector.broadcast %cst_11 : f32 to vector<32x128xf32>
    %14 = arith.maximumf %12, %13 : vector<32x128xf32>
    %c0_12 = arith.constant 0 : index
    %c0_13 = arith.constant 0 : index
    %15 = vector.load %arg6[%c0_12, %c0_13] : memref<1x32xf32, #tpu.memory_space<vmem>>, vector<1x32xf32>
    %cst_14 = arith.constant dense<0.000000e+00> : vector<1x128xf32>
    %16 = tpu.matmul %15, %14, %cst_14 {dimension_numbers = #tpu.dot_dimension_numbers<[1], [0], [0], [1], [0, 0, 1, 1], [], []>} : vector<1x32xf32>, vector<32x128xf32>, vector<1x128xf32> -> vector<1x128xf32>
    %c0_15 = arith.constant 0 : index
    %17 = memref.load %arg7[%c0_15] : memref<1xf32, #tpu.memory_space<smem>>
    %18 = vector.broadcast %17 : f32 to vector<1x128xf32>
    %19 = arith.addf %16, %18 : vector<1x128xf32>
    %20 = arith.negf %19 : vector<1x128xf32>
    %21 = math.exp %20 : vector<1x128xf32>
    %cst_16 = arith.constant 1.000000e+00 : f32
    %22 = vector.broadcast %cst_16 : f32 to vector<1x128xf32>
    %23 = arith.addf %22, %21 : vector<1x128xf32>
    %24 = arith.divf %22, %23 : vector<1x128xf32>
    %c0_17 = arith.constant 0 : index
    %c0_18 = arith.constant 0 : index
    %25 = vector.load %arg8[%c0_17, %c0_18] : memref<1x128xf32, #tpu.memory_space<vmem>>, vector<1x128xf32>
    tpu.vector_store %arg8[%c0_17, %c0_18], %24 {strides = array<i32>} : memref<1x128xf32, #tpu.memory_space<vmem>>, vector<1x128xf32>,
    return
  }
  func.func @transform_0(%arg0: i32) -> (i32, i32) {
    %c0_i32 = arith.constant 0 : i32
    %c0_i32_0 = arith.constant 0 : i32
    return %c0_i32, %arg0 : i32, i32
  }
  func.func @transform_1(%arg0: i32) -> (i32, i32) {
    %c0_i32 = arith.constant 0 : i32
    %c0_i32_0 = arith.constant 0 : i32
    %c0_i32_1 = arith.constant 0 : i32
    return %c0_i32, %c0_i32_0 : i32, i32
  }
  func.func @transform_2(%arg0: i32) -> (i32, i32) {
    %c0_i32 = arith.constant 0 : i32
    %c0_i32_0 = arith.constant 0 : i32
    %c0_i32_1 = arith.constant 0 : i32
    return %c0_i32, %c0_i32_0 : i32, i32
  }
  func.func @transform_3(%arg0: i32) -> (i32, i32) {
    %c0_i32 = arith.constant 0 : i32
    %c0_i32_0 = arith.constant 0 : i32
    %c0_i32_1 = arith.constant 0 : i32
    return %c0_i32, %c0_i32_0 : i32, i32
  }
  func.func @transform_4(%arg0: i32) -> (i32, i32) {
    %c0_i32 = arith.constant 0 : i32
    %c0_i32_0 = arith.constant 0 : i32
    %c0_i32_1 = arith.constant 0 : i32
    return %c0_i32, %c0_i32_0 : i32, i32
  }
  func.func @transform_5(%arg0: i32) -> (i32, i32) {
    %c0_i32 = arith.constant 0 : i32
    %c0_i32_0 = arith.constant 0 : i32
    %c0_i32_1 = arith.constant 0 : i32
    return %c0_i32, %c0_i32_0 : i32, i32
  }
  func.func @transform_6(%arg0: i32) -> i32 {
    %c0_i32 = arith.constant 0 : i32
    %c0_i32_0 = arith.constant 0 : i32
    return %c0_i32 : i32
  }
  func.func @transform_7(%arg0: i32) -> (i32, i32) {
    %c0_i32 = arith.constant 0 : i32
    %c0_i32_0 = arith.constant 0 : i32
    return %c0_i32, %arg0 : i32, i32
  }
}

</mosaic_0001>

<llo_original>
// kernel: tpu_custom_call.1
$region0: #{tpu_custom_call.1}
  #allocation0 [shape = 'u32[]', space=smem, size = 0x4, offset = 0x4, fixed_abs, tag = 'smem constant byte address 0x4 - core index']
  #allocation1 [shape = 'u32[144,128]{1,0:T(1,128)}', space=vmem, size = 0x12000, scoped, tag = 'internal scratch']
  #allocation2 [shape = 'f32[1]{0:T(128)S(6)}', space=smem, size = 0x200, scoped, tag = 'scoped memory for tpu_custom_call.1']
  %s0 = inlined_call_operand.vmem [shape: f32[16,256], index: 0, kind: input, shape index: {}]
  %s1 = inlined_call_operand.vmem [shape: f32[32,16], index: 1, kind: input, shape index: {}]
  %s2 = inlined_call_operand.vmem [shape: f32[32,1], index: 2, kind: input, shape index: {}]
  %s3 = inlined_call_operand.vmem [shape: f32[32,32], index: 3, kind: input, shape index: {}]
  %s4 = inlined_call_operand.vmem [shape: f32[32,1], index: 4, kind: input, shape index: {}]
  %s5 = inlined_call_operand.vmem [shape: f32[1,32], index: 5, kind: input, shape index: {}]
  %s6 = inlined_call_operand.<no memory space> [shape: f32[1], index: 6, kind: input, shape index: {}]
  %s7 = inlined_call_operand.hbm [shape: f32[1,256], index: 7, kind: output, shape index: {}]
  %s8 = sld [smem:[#allocation0]]
  $region99: #{tpu_custom_call.1} parent=0
    _
  %s10 = ssub.s32 1, %s8
  %s11 = scalar_select 0, %s10, %s8
  %12 = sst [smem:[#allocation2]] %s6
  $region1: #{tpu_custom_call.1} parent=0
    #allocation3 [shape = 'u8[16384]{0}', space=vmem, size = 0x4000, scoped, tag = 'input window, operand 0']
    #allocation4 [shape = 'u8[1024]{0}', space=vmem, size = 0x400, scoped, tag = 'output window, operand 0']
    #allocation5 [shape = 's32[2]{0}', space=sflag, size = 0x8, scoped, tag = 'scoped memory for tpu_custom_call.1']
    %13 = vsyncpa [#allocation5], 0
    %s14 = scalar_lea.sflag [#allocation5], 1
    %15 = vsyncpa %s14, 0
    loop: start=0, step=1, limit=4
    $region2: #{tpu_custom_call.1} parent=1 // loop_pre_header
      _
    $region3: #{tpu_custom_call.1} parent=1 // loop_header
      %s17 = sphi 0, %s21
      %p18 = scmp.ge.s32.totalorder %s17, 4
      %s27 = sphi 0, %s29
      %s30 = sphi 0, %s27
      %s31 = sphi 0, %s30
      %s47 = sphi 0, %s31
      %s51 = sphi 0, %s51
      %s53 = sphi 0, %s51
      %s54 = sphi 0, %s53
      %s68 = sphi 0, %s54
      %s72 = sphi 0, %s72
      %s74 = sphi 0, %s72
      %s75 = sphi 0, %s74
      %s89 = sphi 0, %s75
      %s93 = sphi 0, %s93
      %s95 = sphi 0, %s93
      %s96 = sphi 0, %s95
      %s110 = sphi 0, %s96
      %s114 = sphi 0, %s114
      %s116 = sphi 0, %s114
      %s117 = sphi 0, %s116
      %s131 = sphi 0, %s117
      %s135 = sphi 0, %s135
      %s137 = sphi 0, %s135
      %s138 = sphi 0, %s137
      %s152 = sphi 0, %s138
      %s156 = sphi 0, %s156
      %s158 = sphi 0, %s156
      %s159 = sphi 0, %s158
      %s173 = sphi 0, %s159
      %s179 = sphi 0, %s181
      %s182 = sphi 0, %s179
      %s183 = sphi 0, %s182
      %s199 = sphi 0, %s183
    $region4: #{tpu_custom_call.1} parent=1 // loop_header_branch
      %20 = sbr.rel (%p18) target = $region8
    $region5: #{tpu_custom_call.1} parent=1 // loop_body
      %s22 = ssub.s32 %s17, 1
      %s23 = ssub.s32 %s17, 2
      %s24 = sadd.s32 %s17, 1
      %s25 = ssub.s32 %s17, %s24
      %p26 = scmp.eq.s32.totalorder %s25, 0
      %s28 = sadd.s32 %s27, 1
      %s29 = scalar_select %p26, %s27, %s28
      %p32 = pneg %p26
      %p33 = scmp.eq.s32.totalorder %s17, 1
      %p34 = por %p32, %p33
      %p35 = scmp.ne.s32.totalorder %s27, %s30
      %p36 = scmp.eq.s32.totalorder %s17, 0
      %p37 = por %p35, %p36
      %p38 = scmp.ne.s32.totalorder %s27, %s30
      %p39 = scmp.eq.s32.totalorder %s22, 1
      %p40 = por %p38, %p39
      %p41 = scmp.ne.s32.totalorder %s30, %s31
      %p42 = scmp.eq.s32.totalorder %s22, 0
      %p43 = por %p41, %p42
      %p44 = scmp.ne.s32.totalorder %s30, %s31
      %p45 = scmp.eq.s32.totalorder %s23, 1
      %p46 = por %p44, %p45
      %p48 = scmp.ne.s32.totalorder %s31, %s47
      %p49 = scmp.eq.s32.totalorder %s23, 0
      %p50 = por %p48, %p49
      %s52 = sadd.s32 %s51, 1
      %p55 = scmp.eq.s32.totalorder %s17, 1
      %p56 = scmp.ne.s32.totalorder %s51, %s53
      %p57 = scmp.eq.s32.totalorder %s17, 0
      %p58 = por %p56, %p57
      %p59 = scmp.ne.s32.totalorder %s51, %s53
      %p60 = scmp.eq.s32.totalorder %s22, 1
      %p61 = por %p59, %p60
      %p62 = scmp.ne.s32.totalorder %s53, %s54
      %p63 = scmp.eq.s32.totalorder %s22, 0
      %p64 = por %p62, %p63
      %p65 = scmp.ne.s32.totalorder %s53, %s54
      %p66 = scmp.eq.s32.totalorder %s23, 1
      %p67 = por %p65, %p66
      %p69 = scmp.ne.s32.totalorder %s54, %s68
      %p70 = scmp.eq.s32.totalorder %s23, 0
      %p71 = por %p69, %p70
      %s73 = sadd.s32 %s72, 1
      %p76 = scmp.eq.s32.totalorder %s17, 1
      %p77 = scmp.ne.s32.totalorder %s72, %s74
      %p78 = scmp.eq.s32.totalorder %s17, 0
      %p79 = por %p77, %p78
      %p80 = scmp.ne.s32.totalorder %s72, %s74
      %p81 = scmp.eq.s32.totalorder %s22, 1
      %p82 = por %p80, %p81
      %p83 = scmp.ne.s32.totalorder %s74, %s75
      %p84 = scmp.eq.s32.totalorder %s22, 0
      %p85 = por %p83, %p84
      %p86 = scmp.ne.s32.totalorder %s74, %s75
      %p87 = scmp.eq.s32.totalorder %s23, 1
      %p88 = por %p86, %p87
      %p90 = scmp.ne.s32.totalorder %s75, %s89
      %p91 = scmp.eq.s32.totalorder %s23, 0
      %p92 = por %p90, %p91
      %s94 = sadd.s32 %s93, 1
      %p97 = scmp.eq.s32.totalorder %s17, 1
      %p98 = scmp.ne.s32.totalorder %s93, %s95
      %p99 = scmp.eq.s32.totalorder %s17, 0
      %p100 = por %p98, %p99
      %p101 = scmp.ne.s32.totalorder %s93, %s95
      %p102 = scmp.eq.s32.totalorder %s22, 1
      %p103 = por %p101, %p102
      %p104 = scmp.ne.s32.totalorder %s95, %s96
      %p105 = scmp.eq.s32.totalorder %s22, 0
      %p106 = por %p104, %p105
      %p107 = scmp.ne.s32.totalorder %s95, %s96
      %p108 = scmp.eq.s32.totalorder %s23, 1
      %p109 = por %p107, %p108
      %p111 = scmp.ne.s32.totalorder %s96, %s110
      %p112 = scmp.eq.s32.totalorder %s23, 0
      %p113 = por %p111, %p112
      %s115 = sadd.s32 %s114, 1
      %p118 = scmp.eq.s32.totalorder %s17, 1
      %p119 = scmp.ne.s32.totalorder %s114, %s116
      %p120 = scmp.eq.s32.totalorder %s17, 0
      %p121 = por %p119, %p120
      %p122 = scmp.ne.s32.totalorder %s114, %s116
      %p123 = scmp.eq.s32.totalorder %s22, 1
      %p124 = por %p122, %p123
      %p125 = scmp.ne.s32.totalorder %s116, %s117
      %p126 = scmp.eq.s32.totalorder %s22, 0
      %p127 = por %p125, %p126
      %p128 = scmp.ne.s32.totalorder %s116, %s117
      %p129 = scmp.eq.s32.totalorder %s23, 1
      %p130 = por %p128, %p129
      %p132 = scmp.ne.s32.totalorder %s117, %s131
      %p133 = scmp.eq.s32.totalorder %s23, 0
      %p134 = por %p132, %p133
      %s136 = sadd.s32 %s135, 1
      %p139 = scmp.eq.s32.totalorder %s17, 1
      %p140 = scmp.ne.s32.totalorder %s135, %s137
      %p141 = scmp.eq.s32.totalorder %s17, 0
      %p142 = por %p140, %p141
      %p143 = scmp.ne.s32.totalorder %s135, %s137
      %p144 = scmp.eq.s32.totalorder %s22, 1
      %p145 = por %p143, %p144
      %p146 = scmp.ne.s32.totalorder %s137, %s138
      %p147 = scmp.eq.s32.totalorder %s22, 0
      %p148 = por %p146, %p147
      %p149 = scmp.ne.s32.totalorder %s137, %s138
      %p150 = scmp.eq.s32.totalorder %s23, 1
      %p151 = por %p149, %p150
      %p153 = scmp.ne.s32.totalorder %s138, %s152
      %p154 = scmp.eq.s32.totalorder %s23, 0
      %p155 = por %p153, %p154
      %s157 = sadd.s32 %s156, 1
      %p160 = scmp.eq.s32.totalorder %s17, 1
      %p161 = scmp.ne.s32.totalorder %s156, %s158
      %p162 = scmp.eq.s32.totalorder %s17, 0
      %p163 = por %p161, %p162
      %p164 = scmp.ne.s32.totalorder %s156, %s158
      %p165 = scmp.eq.s32.totalorder %s22, 1
      %p166 = por %p164, %p165
      %p167 = scmp.ne.s32.totalorder %s158, %s159
      %p168 = scmp.eq.s32.totalorder %s22, 0
      %p169 = por %p167, %p168
      %p170 = scmp.ne.s32.totalorder %s158, %s159
      %p171 = scmp.eq.s32.totalorder %s23, 1
      %p172 = por %p170, %p171
      %p174 = scmp.ne.s32.totalorder %s159, %s173
      %p175 = scmp.eq.s32.totalorder %s23, 0
      %p176 = por %p174, %p175
      %s177 = ssub.s32 %s17, %s24
      %p178 = scmp.eq.s32.totalorder %s177, 0
      %s180 = sadd.s32 %s179, 1
      %s181 = scalar_select %p178, %s179, %s180
      %p184 = pneg %p178
      %p185 = scmp.eq.s32.totalorder %s17, 1
      %p186 = por %p184, %p185
      %p187 = scmp.ne.s32.totalorder %s179, %s182
      %p188 = scmp.eq.s32.totalorder %s17, 0
      %p189 = por %p187, %p188
      %p190 = scmp.ne.s32.totalorder %s179, %s182
      %p191 = scmp.eq.s32.totalorder %s22, 1
      %p192 = por %p190, %p191
      %p193 = scmp.ne.s32.totalorder %s182, %s183
      %p194 = scmp.eq.s32.totalorder %s22, 0
      %p195 = por %p193, %p194
      %p196 = scmp.ne.s32.totalorder %s182, %s183
      %p197 = scmp.eq.s32.totalorder %s23, 1
      %p198 = por %p196, %p197
      %p200 = scmp.ne.s32.totalorder %s183, %s199
      %p201 = scmp.eq.s32.totalorder %s23, 0
      %p202 = por %p200, %p201
      %p203 = scmp.le.s32.totalorder 1, %s17
      %p204 = scmp.lt.s32.totalorder %s17, 3
      %p205 = pnand %p203, %p204
      %p206 = pneg %p205
      // Predicated region
      $region9: #{tpu_custom_call.1} parent=5 // pred_check
        _
      $region10: #{tpu_custom_call.1} parent=5 // pred_check_branch
        %208 = sbr.rel (%p205) target = $region12
      $region11: #{tpu_custom_call.1} parent=5 // pred_region
        %s209 = ssub.s32 %s17, 1
        // Predicated region
        $region13: #{tpu_custom_call.1} parent=11 // pred_check
          %p210 = pneg %p64
        $region14: #{tpu_custom_call.1} parent=11 // pred_check_branch
          %212 = sbr.rel (%p210) target = $region16
        $region15: #{tpu_custom_call.1} parent=11 // pred_region
          _
        $region16: #{tpu_custom_call.1} parent=11 // pred_fallthru
          _
        // Predicated region
        $region17: #{tpu_custom_call.1} parent=11 // pred_check
          %p213 = pneg %p85
        $region18: #{tpu_custom_call.1} parent=11 // pred_check_branch
          %215 = sbr.rel (%p213) target = $region20
        $region19: #{tpu_custom_call.1} parent=11 // pred_region
          _
        $region20: #{tpu_custom_call.1} parent=11 // pred_fallthru
          _
        // Predicated region
        $region21: #{tpu_custom_call.1} parent=11 // pred_check
          %p216 = pneg %p106
        $region22: #{tpu_custom_call.1} parent=11 // pred_check_branch
          %218 = sbr.rel (%p216) target = $region24
        $region23: #{tpu_custom_call.1} parent=11 // pred_region
          _
        $region24: #{tpu_custom_call.1} parent=11 // pred_fallthru
          _
        // Predicated region
        $region25: #{tpu_custom_call.1} parent=11 // pred_check
          %p219 = pneg %p127
        $region26: #{tpu_custom_call.1} parent=11 // pred_check_branch
          %221 = sbr.rel (%p219) target = $region28
        $region27: #{tpu_custom_call.1} parent=11 // pred_region
          _
        $region28: #{tpu_custom_call.1} parent=11 // pred_fallthru
          _
        // Predicated region
        $region29: #{tpu_custom_call.1} parent=11 // pred_check
          %p222 = pneg %p148
        $region30: #{tpu_custom_call.1} parent=11 // pred_check_branch
          %224 = sbr.rel (%p222) target = $region32
        $region31: #{tpu_custom_call.1} parent=11 // pred_region
          _
        $region32: #{tpu_custom_call.1} parent=11 // pred_fallthru
          _
        // Predicated region
        $region33: #{tpu_custom_call.1} parent=11 // pred_check
          %p225 = pneg %p169
        $region34: #{tpu_custom_call.1} parent=11 // pred_check_branch
          %227 = sbr.rel (%p225) target = $region36
        $region35: #{tpu_custom_call.1} parent=11 // pred_region
          _
        $region36: #{tpu_custom_call.1} parent=11 // pred_fallthru
          _
      $region12: #{tpu_custom_call.1} parent=5 // pred_fallthru
        _
      %p228 = scmp.lt.s32.totalorder %s17, 2
      // Predicated region
      $region37: #{tpu_custom_call.1} parent=5 // pred_check
        %p229 = pneg %p228
      $region38: #{tpu_custom_call.1} parent=5 // pred_check_branch
        %231 = sbr.rel (%p229) target = $region40
      $region39: #{tpu_custom_call.1} parent=5 // pred_region
        // Predicated region
        $region41: #{tpu_custom_call.1} parent=39 // pred_check
          %p232 = pneg %p37
        $region42: #{tpu_custom_call.1} parent=39 // pred_check_branch
          %234 = sbr.rel (%p232) target = $region44
        $region43: #{tpu_custom_call.1} parent=39 // pred_region
          %s235 = sand.u32 %s27, 1
          %s236 = sand.u32 %s27, 1
          %s237 = smul.addr %s236, 16
          %s238 = scalar_lea.vmem [#allocation3], %s237
          %s239 = smul.addr %s17, 8
          %s240 = scalar_lea.vmem %s0, %s239
          // Predicated region
          $region45: #{tpu_custom_call.1} parent=43 // pred_check
            _
          $region46: #{tpu_custom_call.1} parent=43 // pred_check_branch
            %242 = sbr.rel (0) target = $region48
          $region47: #{tpu_custom_call.1} parent=43 // pred_region
            // Predicated region
            $region49: #{tpu_custom_call.1} parent=47 // pred_check
              _
            $region50: #{tpu_custom_call.1} parent=47 // pred_check_branch
              %244 = sbr.rel (0) target = $region52
            $region51: #{tpu_custom_call.1} parent=47 // pred_region
              // Predicated region
              $region64: #{tpu_custom_call.1} parent=51 // pred_check
                _
              $region65: #{tpu_custom_call.1} parent=51 // pred_check_branch
                %261 = sbr.rel (0) target = $region67
              $region66: #{tpu_custom_call.1} parent=51 // pred_region
                loop: start=0, step=1, limit=1
                $region68: #{tpu_custom_call.1} parent=66 // loop_pre_header
                  _
                $region69: #{tpu_custom_call.1} parent=66 // loop_header
                  %s263 = sphi 0, %s267
                  %p264 = scmp.ge.s32.totalorder %s263, 1
                  %s268 = sphi %s240, %s240
                  %s269 = sphi %s238, %s238
                $region70: #{tpu_custom_call.1} parent=66 // loop_header_branch
                  %266 = sbr.rel (%p264) target = $region74
                $region71: #{tpu_custom_call.1} parent=66 // loop_body
                  %v270 = vld [vmem:[%s268] sm:$0xff]
                  %271 = vst [vmem:[%s269] sm:$0xff] %v270
                  %v272 = vld [vmem:[%s268 + $0x10] sm:$0xff]
                  %273 = vst [vmem:[%s269 + $0x8] sm:$0xff] %v272
                $region72: #{tpu_custom_call.1} parent=66 // loop_footer
                  %s267 = sadd.s32 1, %s263
                $region73: #{tpu_custom_call.1} parent=66 // loop_footer_branch
                  %262 = sbr.rel target = $region69
                $region74: #{tpu_custom_call.1} parent=66 // loop_exit
                  _
              $region67: #{tpu_custom_call.1} parent=51 // pred_fallthru
                _
              // Predicated region
              $region75: #{tpu_custom_call.1} parent=51 // pred_check
                _
              $region76: #{tpu_custom_call.1} parent=51 // pred_check_branch
                %275 = sbr.rel target = $region78
              $region77: #{tpu_custom_call.1} parent=51 // pred_region
                _
              $region78: #{tpu_custom_call.1} parent=51 // pred_fallthru
                _
            $region52: #{tpu_custom_call.1} parent=47 // pred_fallthru
              _
            // Predicated region
            $region53: #{tpu_custom_call.1} parent=47 // pred_check
              _
            $region54: #{tpu_custom_call.1} parent=47 // pred_check_branch
              %246 = sbr.rel target = $region56
            $region55: #{tpu_custom_call.1} parent=47 // pred_region
              loop: start=0, step=1, limit=1
              $region57: #{tpu_custom_call.1} parent=55 // loop_pre_header
                _
              $region58: #{tpu_custom_call.1} parent=55 // loop_header
                %s249 = sphi 0, %s253
                %p250 = scmp.ge.s32.totalorder %s249, 1
                %s254 = sphi %s240, %s240
                %s255 = sphi %s238, %s238
              $region59: #{tpu_custom_call.1} parent=55 // loop_header_branch
                %252 = sbr.rel (%p250) target = $region63
              $region60: #{tpu_custom_call.1} parent=55 // loop_body
                %v256 = vld [vmem:[%s254] sm:$0xff]
                %257 = vst [vmem:[%s255] sm:$0xff] %v256
                %v258 = vld [vmem:[%s254 + $0x10] sm:$0xff]
                %259 = vst [vmem:[%s255 + $0x8] sm:$0xff] %v258
              $region61: #{tpu_custom_call.1} parent=55 // loop_footer
                %s253 = sadd.s32 1, %s249
              $region62: #{tpu_custom_call.1} parent=55 // loop_footer_branch
                %248 = sbr.rel target = $region58
              $region63: #{tpu_custom_call.1} parent=55 // loop_exit
                _
            $region56: #{tpu_custom_call.1} parent=47 // pred_fallthru
              _
          $region48: #{tpu_custom_call.1} parent=43 // pred_fallthru
            _
          %276 = vnop
        $region44: #{tpu_custom_call.1} parent=39 // pred_fallthru
          _
      $region40: #{tpu_custom_call.1} parent=5 // pred_fallthru
        _
      %p277 = scmp.le.s32.totalorder 1, %s17
      %p278 = scmp.lt.s32.totalorder %s17, 3
      %p279 = pnand %p277, %p278
      %p280 = pneg %p279
      // Predicated region
      $region79: #{tpu_custom_call.1} parent=5 // pred_check
        _
      $region80: #{tpu_custom_call.1} parent=5 // pred_check_branch
        %282 = sbr.rel (%p279) target = $region82
      $region81: #{tpu_custom_call.1} parent=5 // pred_region
        %s283 = ssub.s32 %s17, 1
        %s284 = sand.u32 %s30, 1
        %s285 = sand.u32 %s30, 1
        %s286 = smul.addr %s285, 16
        %s287 = scalar_lea.vmem [#allocation3], %s286
        // Predicated region
        $region83: #{tpu_custom_call.1} parent=81 // pred_check
          %p288 = pneg %p43
        $region84: #{tpu_custom_call.1} parent=81 // pred_check_branch
          %290 = sbr.rel (%p288) target = $region86
        $region85: #{tpu_custom_call.1} parent=81 // pred_region
          _
        $region86: #{tpu_custom_call.1} parent=81 // pred_fallthru
          _
        %s291 = sand.u32 %s30, 1
        %s292 = sand.u32 %s30, 1
        %s293 = smul.addr %s292, 16
        %s294 = scalar_lea.vmem [#allocation3], %s293
        %p295 = pneg %p43
        %p296 = pneg %p40
        %p297 = pneg %p64
        %p298 = pneg %p61
        %p299 = pneg %p85
        %p300 = pneg %p82
        %p301 = pneg %p106
        %p302 = pneg %p103
        %p303 = pneg %p127
        %p304 = pneg %p124
        %p305 = pneg %p148
        %p306 = pneg %p145
        %p307 = pneg %p169
        %p308 = pneg %p166
        %p309 = pneg %p195
        %p310 = pneg %p192
        %s311 = sand.u32 %s182, 1
        %s312 = scalar_lea.sflag [#allocation5], %s311
        %s313 = sand.u32 %s182, 1
        %s314 = scalar_lea.vmem [#allocation4], %s313
        %v315 = vld [vmem:[%s287] sm:$0xff]
        %v316 = vld [vmem:[%s287 + $0x8] sm:$0xff]
        %v317 = vld [vmem:[%s1] sm:$0xff]
        %v318 = vld [vmem:[%s1 + $0x8] sm:$0xff]
        %v319 = vld [vmem:[%s1 + $0x10] sm:$0xff]
        %v320 = vld [vmem:[%s1 + $0x18] sm:$0xff]
        %v321 = vld [vmem:[%s2] sm:$0xff]
        %v322 = vld [vmem:[%s2 + $0x8] sm:$0xff]
        %v323 = vld [vmem:[%s2 + $0x10] sm:$0xff]
        %v324 = vld [vmem:[%s2 + $0x18] sm:$0xff]
        %326 = vset.pattern.permute.xlu0 0
        %327 = vperm.xlu0 %326, %v321
        %v328 = vpop.permute.xlu0 %327
        %331 = vset.pattern.permute.xlu0 0
        %332 = vperm.xlu0 %331, %v322
        %v333 = vpop.permute.xlu0 %332
        %336 = vset.pattern.permute.xlu0 0
        %337 = vperm.xlu0 %336, %v323
        %v338 = vpop.permute.xlu0 %337
        %341 = vset.pattern.permute.xlu0 0
        %342 = vperm.xlu0 %341, %v324
        %v343 = vpop.permute.xlu0 %342
        %vm345 = vcmask 130048
        %v347 = vsel %vm345, %v317, 0
        %v350 = vsel %vm345, %v318, 0
        %v353 = vsel %vm345, %v319, 0
        %v356 = vsel %vm345, %v320, 0
        %358 = vmatprep.subr.mxu0 0.0
        %359 = vmatpush1.msra.mxu0 %v315
        %360 = vmatprep.subr.mxu0 0.0
        %361 = vmatpush1.msra.mxu0 %v316
        %362 = vmatprep.subr.mxu0 0.0
        %363 = vmatpush1.msra.mxu0 0.0
        %364 = vmatprep.subr.mxu0 0.0
        %365 = vmatpush1.msra.mxu0 0.0
        %366 = vmatprep.subr.mxu0 0.0
        %367 = vmatpush1.msra.mxu0 0.0
        %368 = vmatprep.subr.mxu0 0.0
        %369 = vmatpush1.msra.mxu0 0.0
        %370 = vmatprep.subr.mxu0 0.0
        %371 = vmatpush1.msra.mxu0 0.0
        %372 = vmatprep.subr.mxu0 0.0
        %373 = vmatpush1.msra.mxu0 0.0
        %374 = vmatprep.subr.mxu0 0.0
        %375 = vmatpush1.msra.mxu0 0.0
        %376 = vmatprep.subr.mxu0 0.0
        %377 = vmatpush1.msra.mxu0 0.0
        %378 = vmatprep.subr.mxu0 0.0
        %379 = vmatpush1.msra.mxu0 0.0
        %380 = vmatprep.subr.mxu0 0.0
        %381 = vmatpush1.msra.mxu0 0.0
        %382 = vmatprep.subr.mxu0 0.0
        %383 = vmatpush1.msra.mxu0 0.0
        %384 = vmatprep.subr.mxu0 0.0
        %385 = vmatpush1.msra.mxu0 0.0
        %386 = vmatprep.subr.mxu0 0.0
        %387 = vmatpush1.msra.mxu0 0.0
        %388 = vmatprep.subr.mxu0 0.0
        %389 = vmatpush1.msra.mxu0 0.0
        %390 = vmatprep.subr.mxu0 0.0
        %391 = vmatpush1.msra.mxu0 0.0
        %392 = vmatprep.subr.mxu0 0.0
        %393 = vmatpush1.msra.mxu0 0.0
        %394 = vmatprep.subr.mxu0 0.0
        %395 = vmatpush1.msra.mxu0 0.0
        %396 = vmatprep.subr.mxu0 0.0
        %397 = vmatpush1.msra.mxu0 0.0
        %398 = vmatprep.subr.mxu0 0.0
        %399 = vmatpush1.msra.mxu0 0.0
        %400 = vmatprep.subr.mxu0 0.0
        %401 = vmatpush1.msra.mxu0 0.0
        %402 = vmatprep.subr.mxu0 0.0
        %403 = vmatpush1.msra.mxu0 0.0
        %404 = vmatprep.subr.mxu0 0.0
        %405 = vmatpush1.msra.mxu0 0.0
        %406 = vmatprep.subr.mxu0 0.0
        %407 = vmatpush1.msra.mxu0 0.0
        %408 = vmatprep.subr.mxu0 0.0
        %409 = vmatpush1.msra.mxu0 0.0
        %410 = vmatprep.subr.mxu0 0.0
        %411 = vmatpush1.msra.mxu0 0.0
        %412 = vmatprep.subr.mxu0 0.0
        %413 = vmatpush1.msra.mxu0 0.0
        %414 = vmatprep.subr.mxu0 0.0
        %415 = vmatpush1.msra.mxu0 0.0
        %416 = vmatprep.subr.mxu0 0.0
        %417 = vmatpush1.msra.mxu0 0.0
        %418 = vmatprep.subr.mxu0 0.0
        %419 = vmatpush1.msra.mxu0 0.0
        %420 = vmatprep.subr.mxu0 0.0
        %421 = vmatpush1.msra.mxu0 0.0
        %422 = vmatprep.mubr.f32.mxu0 0.0
        %423 = vmatmul.mubr.f32.gmra.mrb[0].mxu0 %v347
        %v424 = vpop.f32.mrb[0].mxu0
        %v425 = vadd.f32 %v328, %v424
        %v426 = vpop.f32.mrb[0].mxu0
        %427 = vmatprep.mubr.f32.mxu0 0.0
        %428 = vmatmul.mubr.f32.gmra.mrb[0].mxu0 %v350
        %v429 = vpop.f32.mrb[0].mxu0
        %v430 = vadd.f32 %v333, %v429
        %v431 = vpop.f32.mrb[0].mxu0
        %432 = vmatprep.mubr.f32.mxu0 0.0
        %433 = vmatmul.mubr.f32.gmra.mrb[0].mxu0 %v353
        %v434 = vpop.f32.mrb[0].mxu0
        %v435 = vadd.f32 %v338, %v434
        %v436 = vpop.f32.mrb[0].mxu0
        %437 = vmatprep.mubr.f32.mxu0 0.0
        %438 = vmatmul.mubr.f32.gmra.mrb[0].mxu0 %v356
        %v439 = vpop.f32.mrb[0].mxu0
        %v440 = vadd.f32 %v343, %v439
        %v441 = vpop.f32.mrb[0].mxu0
        %442 = vdwg.mxu0
        %v443 = vmax.f32 %v425, 0.0
        %v444 = vmax.f32 %v430, 0.0
        %v445 = vmax.f32 %v435, 0.0
        %v446 = vmax.f32 %v440, 0.0
        %v447 = vld [vmem:[%s3] sm:$0xff]
        %v448 = vld [vmem:[%s3 + $0x8] sm:$0xff]
        %v449 = vld [vmem:[%s3 + $0x10] sm:$0xff]
        %v450 = vld [vmem:[%s3 + $0x18] sm:$0xff]
        %v451 = vld [vmem:[%s4] sm:$0xff]
        %v452 = vld [vmem:[%s4 + $0x8] sm:$0xff]
        %v453 = vld [vmem:[%s4 + $0x10] sm:$0xff]
        %v454 = vld [vmem:[%s4 + $0x18] sm:$0xff]
        %456 = vset.pattern.permute.xlu0 0
        %457 = vperm.xlu0 %456, %v451
        %v458 = vpop.permute.xlu0 %457
        %461 = vset.pattern.permute.xlu0 0
        %462 = vperm.xlu0 %461, %v452
        %v463 = vpop.permute.xlu0 %462
        %466 = vset.pattern.permute.xlu0 0
        %467 = vperm.xlu0 %466, %v453
        %v468 = vpop.permute.xlu0 %467
        %471 = vset.pattern.permute.xlu0 0
        %472 = vperm.xlu0 %471, %v454
        %v473 = vpop.permute.xlu0 %472
        %vm475 = vcmask 261120
        %v477 = vsel %vm475, %v447, 0
        %v480 = vsel %vm475, %v448, 0
        %v483 = vsel %vm475, %v449, 0
        %v486 = vsel %vm475, %v450, 0
        %488 = vmatprep.subr.mxu0 0.0
        %489 = vmatpush1.msra.mxu0 %v443
        %490 = vmatprep.subr.mxu0 0.0
        %491 = vmatpush1.msra.mxu0 %v444
        %492 = vmatprep.subr.mxu0 0.0
        %493 = vmatpush1.msra.mxu0 %v445
        %494 = vmatprep.subr.mxu0 0.0
        %495 = vmatpush1.msra.mxu0 %v446
        %496 = vmatprep.subr.mxu0 0.0
        %497 = vmatpush1.msra.mxu0 0.0
        %498 = vmatprep.subr.mxu0 0.0
        %499 = vmatpush1.msra.mxu0 0.0
        %500 = vmatprep.subr.mxu0 0.0
        %501 = vmatpush1.msra.mxu0 0.0
        %502 = vmatprep.subr.mxu0 0.0
        %503 = vmatpush1.msra.mxu0 0.0
        %504 = vmatprep.subr.mxu0 0.0
        %505 = vmatpush1.msra.mxu0 0.0
        %506 = vmatprep.subr.mxu0 0.0
        %507 = vmatpush1.msra.mxu0 0.0
        %508 = vmatprep.subr.mxu0 0.0
        %509 = vmatpush1.msra.mxu0 0.0
        %510 = vmatprep.subr.mxu0 0.0
        %511 = vmatpush1.msra.mxu0 0.0
        %512 = vmatprep.subr.mxu0 0.0
        %513 = vmatpush1.msra.mxu0 0.0
        %514 = vmatprep.subr.mxu0 0.0
        %515 = vmatpush1.msra.mxu0 0.0
        %516 = vmatprep.subr.mxu0 0.0
        %517 = vmatpush1.msra.mxu0 0.0
        %518 = vmatprep.subr.mxu0 0.0
        %519 = vmatpush1.msra.mxu0 0.0
        %520 = vmatprep.subr.mxu0 0.0
        %521 = vmatpush1.msra.mxu0 0.0
        %522 = vmatprep.subr.mxu0 0.0
        %523 = vmatpush1.msra.mxu0 0.0
        %524 = vmatprep.subr.mxu0 0.0
        %525 = vmatpush1.msra.mxu0 0.0
        %526 = vmatprep.subr.mxu0 0.0
        %527 = vmatpush1.msra.mxu0 0.0
        %528 = vmatprep.subr.mxu0 0.0
        %529 = vmatpush1.msra.mxu0 0.0
        %530 = vmatprep.subr.mxu0 0.0
        %531 = vmatpush1.msra.mxu0 0.0
        %532 = vmatprep.subr.mxu0 0.0
        %533 = vmatpush1.msra.mxu0 0.0
        %534 = vmatprep.subr.mxu0 0.0
        %535 = vmatpush1.msra.mxu0 0.0
        %536 = vmatprep.subr.mxu0 0.0
        %537 = vmatpush1.msra.mxu0 0.0
        %538 = vmatprep.subr.mxu0 0.0
        %539 = vmatpush1.msra.mxu0 0.0
        %540 = vmatprep.subr.mxu0 0.0
        %541 = vmatpush1.msra.mxu0 0.0
        %542 = vmatprep.subr.mxu0 0.0
        %543 = vmatpush1.msra.mxu0 0.0
        %544 = vmatprep.subr.mxu0 0.0
        %545 = vmatpush1.msra.mxu0 0.0
        %546 = vmatprep.subr.mxu0 0.0
        %547 = vmatpush1.msra.mxu0 0.0
        %548 = vmatprep.subr.mxu0 0.0
        %549 = vmatpush1.msra.mxu0 0.0
        %550 = vmatprep.subr.mxu0 0.0
        %551 = vmatpush1.msra.mxu0 0.0
        %552 = vmatprep.mubr.f32.mxu0 0.0
        %553 = vmatmul.mubr.f32.gmra.mrb[0].mxu0 %v477
        %v554 = vpop.f32.mrb[0].mxu0
        %v555 = vadd.f32 %v458, %v554
        %v556 = vpop.f32.mrb[0].mxu0
        %557 = vmatprep.mubr.f32.mxu0 0.0
        %558 = vmatmul.mubr.f32.gmra.mrb[0].mxu0 %v480
        %v559 = vpop.f32.mrb[0].mxu0
        %v560 = vadd.f32 %v463, %v559
        %v561 = vpop.f32.mrb[0].mxu0
        %562 = vmatprep.mubr.f32.mxu0 0.0
        %563 = vmatmul.mubr.f32.gmra.mrb[0].mxu0 %v483
        %v564 = vpop.f32.mrb[0].mxu0
        %v565 = vadd.f32 %v468, %v564
        %v566 = vpop.f32.mrb[0].mxu0
        %567 = vmatprep.mubr.f32.mxu0 0.0
        %568 = vmatmul.mubr.f32.gmra.mrb[0].mxu0 %v486
        %v569 = vpop.f32.mrb[0].mxu0
        %v570 = vadd.f32 %v473, %v569
        %v571 = vpop.f32.mrb[0].mxu0
        %572 = vdwg.mxu0
        %v573 = vmax.f32 %v555, 0.0
        %v574 = vmax.f32 %v560, 0.0
        %v575 = vmax.f32 %v565, 0.0
        %v576 = vmax.f32 %v570, 0.0
        %v577 = vld [vmem:[%s5] sm:$0x1]
        %s578 = sld [smem:[#allocation2]]
        %v579 = vstv %s578
        %v581 = vsel %vm475, %v577, 0
        %583 = vmatprep.subr.mxu0 0.0
        %584 = vmatpush1.msra.mxu0 %v573
        %585 = vmatprep.subr.mxu0 0.0
        %586 = vmatpush1.msra.mxu0 %v574
        %587 = vmatprep.subr.mxu0 0.0
        %588 = vmatpush1.msra.mxu0 %v575
        %589 = vmatprep.subr.mxu0 0.0
        %590 = vmatpush1.msra.mxu0 %v576
        %591 = vmatprep.subr.mxu0 0.0
        %592 = vmatpush1.msra.mxu0 0.0
        %593 = vmatprep.subr.mxu0 0.0
        %594 = vmatpush1.msra.mxu0 0.0
        %595 = vmatprep.subr.mxu0 0.0
        %596 = vmatpush1.msra.mxu0 0.0
        %597 = vmatprep.subr.mxu0 0.0
        %598 = vmatpush1.msra.mxu0 0.0
        %599 = vmatprep.subr.mxu0 0.0
        %600 = vmatpush1.msra.mxu0 0.0
        %601 = vmatprep.subr.mxu0 0.0
        %602 = vmatpush1.msra.mxu0 0.0
        %603 = vmatprep.subr.mxu0 0.0
        %604 = vmatpush1.msra.mxu0 0.0
        %605 = vmatprep.subr.mxu0 0.0
        %606 = vmatpush1.msra.mxu0 0.0
        %607 = vmatprep.subr.mxu0 0.0
        %608 = vmatpush1.msra.mxu0 0.0
        %609 = vmatprep.subr.mxu0 0.0
        %610 = vmatpush1.msra.mxu0 0.0
        %611 = vmatprep.subr.mxu0 0.0
        %612 = vmatpush1.msra.mxu0 0.0
        %613 = vmatprep.subr.mxu0 0.0
        %614 = vmatpush1.msra.mxu0 0.0
        %615 = vmatprep.subr.mxu0 0.0
        %616 = vmatpush1.msra.mxu0 0.0
        %617 = vmatprep.subr.mxu0 0.0
        %618 = vmatpush1.msra.mxu0 0.0
        %619 = vmatprep.subr.mxu0 0.0
        %620 = vmatpush1.msra.mxu0 0.0
        %621 = vmatprep.subr.mxu0 0.0
        %622 = vmatpush1.msra.mxu0 0.0
        %623 = vmatprep.subr.mxu0 0.0
        %624 = vmatpush1.msra.mxu0 0.0
        %625 = vmatprep.subr.mxu0 0.0
        %626 = vmatpush1.msra.mxu0 0.0
        %627 = vmatprep.subr.mxu0 0.0
        %628 = vmatpush1.msra.mxu0 0.0
        %629 = vmatprep.subr.mxu0 0.0
        %630 = vmatpush1.msra.mxu0 0.0
        %631 = vmatprep.subr.mxu0 0.0
        %632 = vmatpush1.msra.mxu0 0.0
        %633 = vmatprep.subr.mxu0 0.0
        %634 = vmatpush1.msra.mxu0 0.0
        %635 = vmatprep.subr.mxu0 0.0
        %636 = vmatpush1.msra.mxu0 0.0
        %637 = vmatprep.subr.mxu0 0.0
        %638 = vmatpush1.msra.mxu0 0.0
        %639 = vmatprep.subr.mxu0 0.0
        %640 = vmatpush1.msra.mxu0 0.0
        %641 = vmatprep.subr.mxu0 0.0
        %642 = vmatpush1.msra.mxu0 0.0
        %643 = vmatprep.subr.mxu0 0.0
        %644 = vmatpush1.msra.mxu0 0.0
        %645 = vmatprep.subr.mxu0 0.0
        %646 = vmatpush1.msra.mxu0 0.0
        %647 = vmatprep.mubr.f32.mxu0 0.0
        %648 = vmatmul.mubr.f32.gmra.mrb[0].mxu0 %v581
        %v649 = vpop.f32.mrb[0].mxu0
        %v650 = vadd.f32 %v579, %v649
        %v651 = vpop.f32.mrb[0].mxu0
        %652 = vdwg.mxu0
        %v653 = vxor.u32 %v650, 2147483648
        %v654 = vmul.f32 %v653, 1.442695
        %v655 = vpow.pop %v654
        %v656 = vadd.f32 %v655, 1.0
        %v657 = vrcp.pop %v656
        %v658 = vmul.f32 1.0, %v657
        %659 = vst [vmem:[%s314] sm:$0x1] %v658
        %s660 = sand.u32 %s182, 1
        %s661 = scalar_lea.sflag [#allocation5], %s660
        %s662 = sand.u32 %s182, 1
        %s663 = scalar_lea.vmem [#allocation4], %s662
        // Predicated region
        $region87: #{tpu_custom_call.1} parent=81 // pred_check
          %p664 = pneg %p192
        $region88: #{tpu_custom_call.1} parent=81 // pred_check_branch
          %666 = sbr.rel (%p664) target = $region90
        $region89: #{tpu_custom_call.1} parent=81 // pred_region
          %s668 = ssub.s32 16, 16
          %669 = vsyncadd %s661, %s668
          %s670 = smul.addr %s22, 16
          %s671 = scalar_lea.hbm %s7, %s670
          %s673 = sshll.u32 %s663, 4
          %s674 = int_to_ptr.vmem [resolvable:$true] %s673
          %676 = dma.vmem_to_hbm [thread:$0]  %s674, 16, %s671, %s661
        $region90: #{tpu_custom_call.1} parent=81 // pred_fallthru
          _
      $region82: #{tpu_custom_call.1} parent=5 // pred_fallthru
        _
      %p677 = scmp.le.s32.totalorder 2, %s17
      // Predicated region
      $region91: #{tpu_custom_call.1} parent=5 // pred_check
        %p678 = pneg %p677
      $region92: #{tpu_custom_call.1} parent=5 // pred_check_branch
        %680 = sbr.rel (%p678) target = $region94
      $region93: #{tpu_custom_call.1} parent=5 // pred_region
        %s681 = ssub.s32 %s17, 2
        // Predicated region
        $region95: #{tpu_custom_call.1} parent=93 // pred_check
          %p682 = pneg %p198
        $region96: #{tpu_custom_call.1} parent=93 // pred_check_branch
          %684 = sbr.rel (%p682) target = $region98
        $region97: #{tpu_custom_call.1} parent=93 // pred_region
          %s685 = sand.u32 %s183, 1
          %s686 = scalar_lea.sflag [#allocation5], %s685
          %s687 = sand.u32 %s183, 1
          %s688 = scalar_lea.vmem [#allocation4], %s687
          %689 = dma.done %s686, 16
        $region98: #{tpu_custom_call.1} parent=93 // pred_fallthru
          _
      $region94: #{tpu_custom_call.1} parent=5 // pred_fallthru
        _
    $region6: #{tpu_custom_call.1} parent=1 // loop_footer
      %s21 = sadd.s32 1, %s17
    $region7: #{tpu_custom_call.1} parent=1 // loop_footer_branch
      %16 = sbr.rel target = $region3
    $region8: #{tpu_custom_call.1} parent=1 // loop_exit
      _
    %690 = vsyncpa [#allocation5], 1
    %s691 = scalar_lea.sflag [#allocation5], 1
    %692 = vsyncpa %s691, 1

</llo_original>
